<compile_context>
chip_gen: v5e
topology: v5e:2x2
jax: 0.10.0
libtpu: 0.0.40
codegen_flags: <defaults>
</compile_context>

<pallas_src>
import functools

import jax
import jax.numpy as jnp
from jax.experimental import pallas as pl
from jax.experimental.pallas import tpu as pltpu

LANE = 128


def _identity_kernel(x_ref, o_ref):
    # Pure pass-through of the current VMEM tile.
    o_ref[...] = x_ref[...]


def _budget():
    """(tile_bytes, vmem_limit_bytes): chip-aware with a conservative default."""
    tile_bytes, vmem_limit = 2 << 20, 32 << 20            # safe on v7x (64 MiB VMEM/TC)
    try:
        cap = pltpu.get_tpu_info().vmem_capacity_bytes
        if cap >= (96 << 20):                              # v5e / v6e: 128 MiB VMEM
            tile_bytes, vmem_limit = 4 << 20, 64 << 20
    except Exception:
        pass
    return tile_bytes, vmem_limit


@functools.partial(jax.jit, static_argnames=("force_kernel",))
def identity_pallas(x: jnp.ndarray, *, force_kernel: bool = False) -> jnp.ndarray:
    """Identity forward pass: returns an array equal to x (same shape, dtype).

    Default is the optimal no-op (`return x`).  `force_kernel=True` routes the
    data through a tiled Pallas VMEM copy (demonstration / benchmarking only).
    """
    orig_shape = x.shape
    total = x.size
    if not force_kernel or total == 0:
        # Identity requires zero HBM traffic: the best "kernel" is no kernel.
        return x

    itemsize = jnp.dtype(x.dtype).itemsize
    tile_bytes, vmem_limit = _budget()
    # Minimum sublane multiple: 8 for 4-byte, 16 for 2-byte, 32 for 1-byte dtypes.
    sub = max(8, 32 // itemsize)

    # --- Lane-dense flatten ---------------------------------------------------
    # Prefer a last dim that is a large multiple of 128 (unmasked full-lane vst).
    cols = None
    for cand in (1024, 512, 256, 128):
        if total % cand == 0:
            cols = cand
            break
    if cols is None:
        # Awkward sizes: pad to a 128-multiple instead of using masked stores.
        cols = 256
    pad = (-total) % cols
    flat = x.reshape(total)
    if pad:
        flat = jnp.pad(flat, (0, pad))
    rows = (total + pad) // cols
    x2 = flat.reshape(rows, cols)

    # --- Byte-budgeted tiling ---------------------------------------------------
    # Column tile capped so that `sub` rows of it fit the budget (fixes the old
    # overflow where a wide row produced tiles of up to 8x the budget).
    max_tile_cols = max(LANE, (tile_bytes // (sub * itemsize)) // LANE * LANE)
    tile_cols = cols if cols <= max_tile_cols else max_tile_cols
    # Row tile: budget / row-bytes rounded down to a sublane multiple; full
    # extent when everything fits (full-extent blocks are always legal).
    rows_per_tile = max(sub, (tile_bytes // (tile_cols * itemsize)) // sub * sub)
    tile_rows = rows if rows <= rows_per_tile else rows_per_tile

    grid = (pl.cdiv(rows, tile_rows), pl.cdiv(cols, tile_cols))

    out2 = pl.pallas_call(
        _identity_kernel,
        out_shape=jax.ShapeDtypeStruct((rows, cols), x2.dtype),
        grid_spec=pltpu.PrefetchScalarGridSpec(
            num_scalar_prefetch=0,
            grid=grid,
            in_specs=[pl.BlockSpec((tile_rows, tile_cols), lambda i, j: (i, j))],
            out_specs=pl.BlockSpec((tile_rows, tile_cols), lambda i, j: (i, j)),
        ),
        compiler_params=pltpu.CompilerParams(
            dimension_semantics=("parallel", "parallel"),
            vmem_limit_bytes=vmem_limit,
        ),
    )(x2)

    out = out2.reshape(total + pad)
    if pad:
        out = out[:total]
    return out.reshape(orig_shape)


if __name__ == "__main__":
    key = jax.random.PRNGKey(0)
    # NCHW-style input consistent with typical use of Identity in transfer learning.
    x = jax.random.normal(key, (2, 4, 16, 16), dtype=jnp.float32)

    # Exercise the Pallas copy kernel path explicitly.
    y = identity_pallas(x, force_kernel=True)
    jax.block_until_ready(y)
    assert y.shape == x.shape, (y.shape, x.shape)
    assert y.dtype == x.dtype, (y.dtype, x.dtype)
    assert bool(jnp.all(y == x)), "Identity kernel output mismatch"

    # Default (optimal) path: pure no-op.
    z = identity_pallas(x)
    jax.block_until_ready(z)
    assert bool(jnp.all(z == x)), "Identity no-op path mismatch"

    print("KERNEL_OK")
</pallas_src>

<mosaic_0001>
module attributes {stable_mosaic.version = 11 : i64} {
  func.func @_identity_kernel(%arg0: i32, %arg1: i32, %arg2: memref<2x1024xf32, #tpu.memory_space<vmem>>, %arg3: memref<2x1024xf32, #tpu.memory_space<vmem>>) attributes {dimension_semantics = [#tpu.dimension_semantics<parallel>, #tpu.dimension_semantics<parallel>], iteration_bounds = array<i64: 1, 1>, scalar_prefetch = 0 : i64, scratch_operands = 0 : i64, tpu.core_type = #tpu.core_type<tc>, window_params = [{transform_indices = @transform_0, window_bounds = array<i64: 2, 1024>}, {transform_indices = @transform_1, window_bounds = array<i64: 2, 1024>}]} {
    %c0 = arith.constant 0 : index
    %c0_0 = arith.constant 0 : index
    %0 = vector.load %arg2[%c0, %c0_0] : memref<2x1024xf32, #tpu.memory_space<vmem>>, vector<2x1024xf32>
    %c0_1 = arith.constant 0 : index
    %c0_2 = arith.constant 0 : index
    %1 = vector.load %arg3[%c0_1, %c0_2] : memref<2x1024xf32, #tpu.memory_space<vmem>>, vector<2x1024xf32>
    tpu.vector_store %arg3[%c0_1, %c0_2], %0 {strides = array<i32>} : memref<2x1024xf32, #tpu.memory_space<vmem>>, vector<2x1024xf32>,
    return
  }
  func.func @transform_0(%arg0: i32, %arg1: i32) -> (i32, i32) {
    %c0_i32 = arith.constant 0 : i32
    return %arg0, %arg1 : i32, i32
  }
  func.func @transform_1(%arg0: i32, %arg1: i32) -> (i32, i32) {
    %c0_i32 = arith.constant 0 : i32
    return %arg0, %arg1 : i32, i32
  }
}

</mosaic_0001>

<llo_original>
// kernel: identity_pallas.1
$region0: #{identity_pallas.1}
  #allocation0 [shape = 'u32[]', space=smem, size = 0x4, offset = 0x4, fixed_abs, tag = 'smem constant byte address 0x4 - core index']
  #allocation1 [shape = 'u32[72,128]{1,0:T(1,128)}', space=vmem, size = 0x9000, scoped, tag = 'internal scratch']
  %s0 = inlined_call_operand.vmem [shape: f32[2,1024], index: 0, kind: input, shape index: {}]
  %s1 = inlined_call_operand.vmem [shape: f32[2,1024], index: 1, kind: output, shape index: {}]
  %s2 = sld [smem:[#allocation0]]
  $region14: #{identity_pallas.1} parent=0
    _
  %s4 = ssub.s32 1, %s2
  %s5 = scalar_select 0, %s4, %s2
  // Predicated region
  $region2: #{identity_pallas.1} parent=0 // pred_check
    _
  $region3: #{identity_pallas.1} parent=0 // pred_check_branch
    %7 = sbr.rel (0) target = $region5
  $region4: #{identity_pallas.1} parent=0 // pred_region
    _
  $region5: #{identity_pallas.1} parent=0 // pred_fallthru
    _
  %v8 = vld [vmem:[%s0] sm:$0xff]
  %v9 = vld [vmem:[%s0 + $0x8] sm:$0xff]
  %10 = vst [vmem:[%s1] sm:$0xff] %v8
  %11 = vst [vmem:[%s1 + $0x8] sm:$0xff] %v9
  // Predicated region
  $region6: #{identity_pallas.1} parent=0 // pred_check
    _
  $region7: #{identity_pallas.1} parent=0 // pred_check_branch
    %13 = sbr.rel (0) target = $region9
  $region8: #{identity_pallas.1} parent=0 // pred_region
    _
  $region9: #{identity_pallas.1} parent=0 // pred_fallthru
    _
  // Predicated region
  $region10: #{identity_pallas.1} parent=0 // pred_check
    _
  $region11: #{identity_pallas.1} parent=0 // pred_check_branch
    %15 = sbr.rel (0) target = $region13
  $region12: #{identity_pallas.1} parent=0 // pred_region
    _
  $region13: #{identity_pallas.1} parent=0 // pred_fallthru
    _

</llo_original>
